<compile_context>
chip_gen: v7x
topology: tpu7x:2x2x1
jax: 0.10.0
libtpu: 0.0.40
codegen_flags: <defaults>
</compile_context>

<pallas_src>
import functools

import jax
import jax.numpy as jnp
from jax.experimental import pallas as pl
from jax.experimental.pallas import tpu as pltpu


def _dequant_kernel(min_step_ref, q_ref, o_ref, *, bits):
    # min_step_ref: SMEM (2,) float32 -> [min, step]  (the "received" scalars)
    # q_ref:        VMEM tile of int8 quantized values
    # o_ref:        VMEM tile of dequantized output
    st = min_step_ref[1]
    # Fold the additive constant into a single scalar bias (scalar ALU, once
    # per tile): (x + 2^(b-1)) * step + min == x*step + (2^(b-1)*step + min)
    bias = min_step_ref[0] + jnp.float32(2 ** (bits - 1)) * st
    x = q_ref[...].astype(jnp.float32)
    o_ref[...] = (x * st + bias).astype(o_ref.dtype)


def _round_up(x, m):
    return ((x + m - 1) // m) * m


def _is_v7():
    try:
        return "v7" in jax.devices()[0].device_kind.lower()
    except Exception:  # pragma: no cover - defensive
        return False


def qrecv_dequantize(q_int8, min_step, *, bits, out_dtype=jnp.float32):
    """Dequantize an int8 tensor on-TPU.

    q_int8:   int8 array of any shape (the received quantized tensor)
    min_step: float32 array of shape (2,) == [min, step] (received scalars)
    returns:  `out_dtype` array with the same shape as q_int8
    """
    orig_shape = q_int8.shape
    total = int(q_int8.size)
    flat = q_int8.reshape(-1)  # bitcast for a contiguous NCHW tensor

    v7 = _is_v7()
    # Target tile size: ~1M elems (5 MiB traffic/step) normally, ~2M on v7x.
    target_elems = (1024 if v7 else 512) * 2048

    # Lane-dense columns chosen from divisors of `total` -> no pad, no slice.
    cols = None
    for c in (4096, 2048, 1024, 512, 256, 128):
        if total % c == 0:
            cols = c
            break

    if cols is not None:
        rows = total // cols
        needs_pad = False
    else:
        # Fallback (total not a multiple of 128): minimal pad (<128 elems).
        cols = 128
        rows = -(-total // cols)
        needs_pad = True
        flat = jnp.pad(flat, (0, rows * cols - total))

    q2d = flat.reshape(rows, cols)

    # Row-tile cap: multiple of 32 (int8 sublane packing), sized to the target.
    tile_rows_cap = max(32, (target_elems // cols) // 32 * 32)

    if rows > tile_rows_cap:
        tile_rows = tile_rows_cap                 # grid >= 2, ragged last block
    elif v7 and rows >= 64:
        # Guarantee >= 2 grid steps so both v7x TensorCores stream.
        tile_rows = _round_up(-(-rows // 2), 32)
    else:
        tile_rows = rows                          # block == full array: 1 step

    grid = (pl.cdiv(rows, tile_rows),)

    out2d = pl.pallas_call(
        functools.partial(_dequant_kernel, bits=bits),
        out_shape=jax.ShapeDtypeStruct((rows, cols), out_dtype),
        grid=grid,
        in_specs=[
            pl.BlockSpec(memory_space=pltpu.SMEM),              # min/step
            pl.BlockSpec((tile_rows, cols), lambda i: (i, 0)),  # quantized
        ],
        out_specs=pl.BlockSpec((tile_rows, cols), lambda i: (i, 0)),
        compiler_params=pltpu.CompilerParams(
            dimension_semantics=("parallel",),
            vmem_limit_bytes=32 << 20),
    )(min_step.astype(jnp.float32), q2d)

    if needs_pad:
        return out2d.reshape(-1)[:total].reshape(orig_shape)
    return out2d.reshape(orig_shape)  # bitcast


class QRecvLayerTPU:
    """JAX/Pallas analogue of QRecvLayerGPU (bits <= 8 path)."""

    def __init__(self, bits, recv_rank=0, rank=0, out_dtype=jnp.float32):
        assert 1 <= bits <= 8, "this kernel implements the int8 (bits<=8) path"
        self.bits = bits
        self.recv_rank = recv_rank
        self.rank = rank
        self.out_dtype = out_dtype
        # TODO(synk): torch.distributed recv/isend of (min, step, tensor) has
        # no Pallas equivalent; the received payload is passed in explicitly.

    def __call__(self, q_int8, min_step):
        return qrecv_dequantize(q_int8, min_step, bits=self.bits,
                                out_dtype=self.out_dtype)


def _simulate_sender_quantization(x, bits):
    """Plain-JAX reference of QuantizationGPU (what the peer rank would send)."""
    mn = x.min()
    mx = x.max()
    step = (mx - mn) / (2 ** bits - 1)
    step = jnp.where(step == 0, jnp.float32(1.0), step)  # guard constant input
    q = jnp.round((x - mn) / step - 2 ** (bits - 1)).astype(jnp.int8)
    min_step = jnp.stack([mn, step]).astype(jnp.float32)
    return q, min_step


if __name__ == "__main__":
    key = jax.random.PRNGKey(0)
    bits = 8
    N, C, H, W = 2, 4, 16, 16  # layout: NCHW

    # Simulate the tensor that the sending rank quantized + transmitted.
    x_float = jax.random.normal(key, (N, C, H, W), dtype=jnp.float32)
    q_int8, min_step = _simulate_sender_quantization(x_float, bits)

    layer = QRecvLayerTPU(bits=bits, recv_rank=0, rank=1)
    out = layer(q_int8, min_step)
    out = jax.block_until_ready(out)

    # Reference dequantization (DequantizationonGPU semantics) for sanity.
    ref = (q_int8.astype(jnp.float32) + 2 ** (bits - 1)) * min_step[1] + min_step[0]
    assert out.shape == (N, C, H, W) and out.dtype == jnp.float32
    assert jnp.allclose(out, ref, atol=1e-5, rtol=1e-5)

    print("KERNEL_OK")
</pallas_src>

<mosaic_0001>
module attributes {stable_mosaic.version = 11 : i64} {
  func.func @_dequant_kernel(%arg0: i32, %arg1: memref<2xf32, #tpu.memory_space<smem>>, %arg2: memref<1x2048xi8, #tpu.memory_space<vmem>>, %arg3: memref<1x2048xf32, #tpu.memory_space<vmem>>) attributes {dimension_semantics = [#tpu.dimension_semantics<parallel>], iteration_bounds = array<i64: 1>, scalar_prefetch = 0 : i64, scratch_operands = 0 : i64, tpu.core_type = #tpu.core_type<tc>, window_params = [{transform_indices = @transform_0, window_bounds = array<i64: 2>}, {transform_indices = @transform_1, window_bounds = array<i64: 1, 2048>}, {transform_indices = @transform_2, window_bounds = array<i64: 1, 2048>}]} {
    %c1 = arith.constant 1 : index
    %0 = memref.load %arg1[%c1] : memref<2xf32, #tpu.memory_space<smem>>
    %c0 = arith.constant 0 : index
    %1 = memref.load %arg1[%c0] : memref<2xf32, #tpu.memory_space<smem>>
    %cst = arith.constant 1.280000e+02 : f32
    %2 = arith.mulf %cst, %0 : f32
    %3 = arith.addf %1, %2 : f32
    %c0_0 = arith.constant 0 : index
    %c0_1 = arith.constant 0 : index
    %4 = vector.load %arg2[%c0_0, %c0_1] : memref<1x2048xi8, #tpu.memory_space<vmem>>, vector<1x2048xi8>
    %5 = arith.sitofp %4 : vector<1x2048xi8> to vector<1x2048xf32>
    %6 = vector.broadcast %0 : f32 to vector<1x2048xf32>
    %7 = arith.mulf %5, %6 : vector<1x2048xf32>
    %8 = vector.broadcast %3 : f32 to vector<1x2048xf32>
    %9 = arith.addf %7, %8 : vector<1x2048xf32>
    %c0_2 = arith.constant 0 : index
    %c0_3 = arith.constant 0 : index
    %10 = vector.load %arg3[%c0_2, %c0_3] : memref<1x2048xf32, #tpu.memory_space<vmem>>, vector<1x2048xf32>
    tpu.vector_store %arg3[%c0_2, %c0_3], %9 {strides = array<i32>} : memref<1x2048xf32, #tpu.memory_space<vmem>>, vector<1x2048xf32>,
    return
  }
  func.func @transform_0(%arg0: i32) -> i32 {
    %c0_i32 = arith.constant 0 : i32
    %c0_i32_0 = arith.constant 0 : i32
    return %c0_i32 : i32
  }
  func.func @transform_1(%arg0: i32) -> (i32, i32) {
    %c0_i32 = arith.constant 0 : i32
    %c0_i32_0 = arith.constant 0 : i32
    return %arg0, %c0_i32 : i32, i32
  }
  func.func @transform_2(%arg0: i32) -> (i32, i32) {
    %c0_i32 = arith.constant 0 : i32
    %c0_i32_0 = arith.constant 0 : i32
    return %arg0, %c0_i32 : i32, i32
  }
}

</mosaic_0001>

<llo_original>
// kernel: tpu_custom_call.1
$region0: #{tpu_custom_call.1}
  #allocation0 [shape = 'u32[]', space=smem, size = 0x4, offset = 0x4, fixed_abs, tag = 'smem constant byte address 0x4 - core index']
  #allocation1 [shape = 'u32[144,128]{1,0:T(1,128)}', space=vmem, size = 0x12000, scoped, tag = 'internal scratch']
  %s0 = inlined_call_operand.hbm [shape: f32[2], index: 0, kind: input, shape index: {}]
  %s1 = inlined_call_operand.hbm [shape: s8[1,2048], index: 1, kind: input, shape index: {}]
  %s2 = inlined_call_operand.hbm [shape: f32[1,2048], index: 2, kind: output, shape index: {}]
  %s3 = sld [smem:[#allocation0]]
  $region26: #{tpu_custom_call.1} parent=0
    _
  %s5 = ssub.s32 1, %s3
  %s6 = scalar_select 0, %s5, %s3
  $region1: #{tpu_custom_call.1} parent=0
    #allocation2 [shape = 'u8[512]{0}', space=smem, size = 0x200, scoped, tag = 'input window, operand 0, single buffered']
    #allocation3 [shape = 's32[1]{0}', space=sflag, size = 0x4, scoped, tag = 'scoped memory for tpu_custom_call.1']
    #allocation4 [shape = 's32[1]{0}', space=sflag, size = 0x4, scoped, tag = 'scoped memory for tpu_custom_call.1']
    #allocation5 [shape = 's32[1]{0}', space=sflag, size = 0x4, scoped, tag = 'scoped memory for tpu_custom_call.1']
    #allocation6 [shape = 'u8[8192]{0}', space=vmem, size = 0x2000, scoped, tag = 'input window, operand 1, single buffered']
    #allocation7 [shape = 'u8[8192]{0}', space=vmem, size = 0x2000, scoped, tag = 'output window, operand 0, single buffered']
    %7 = vsyncpa [#allocation5], 0
    %8 = vsyncpa [#allocation3], 0
    %9 = vsyncpa [#allocation4], 0
    // Predicated region
    $region2: #{tpu_custom_call.1} parent=1 // pred_check
      _
    $region3: #{tpu_custom_call.1} parent=1 // pred_check_branch
      %11 = sbr.rel (0) target = $region5
    $region4: #{tpu_custom_call.1} parent=1 // pred_region
      %s13 = ssub.s32 16, 16
      %14 = vsyncadd [#allocation5], %s13
      %17 = dma.hbm_to_smem %s0, 16, [#allocation2], [#allocation5]
    $region5: #{tpu_custom_call.1} parent=1 // pred_fallthru
      _
    // Predicated region
    $region6: #{tpu_custom_call.1} parent=1 // pred_check
      _
    $region7: #{tpu_custom_call.1} parent=1 // pred_check_branch
      %19 = sbr.rel (0) target = $region9
    $region8: #{tpu_custom_call.1} parent=1 // pred_region
      %s21 = ssub.s32 256, 256
      %22 = vsyncadd [#allocation3], %s21
      %s24 = sshll.u32 [#allocation6], 4
      %s25 = int_to_ptr.vmem [resolvable:$true] %s24
      %27 = dma.hbm_to_vmem [thread:$0]  %s1, 256, %s25, [#allocation3]
    $region9: #{tpu_custom_call.1} parent=1 // pred_fallthru
      _
    // Predicated region
    $region10: #{tpu_custom_call.1} parent=1 // pred_check
      _
    $region11: #{tpu_custom_call.1} parent=1 // pred_check_branch
      %29 = sbr.rel (0) target = $region13
    $region12: #{tpu_custom_call.1} parent=1 // pred_region
      %30 = dma.done [#allocation5], 16
    $region13: #{tpu_custom_call.1} parent=1 // pred_fallthru
      _
    // Predicated region
    $region14: #{tpu_custom_call.1} parent=1 // pred_check
      _
    $region15: #{tpu_custom_call.1} parent=1 // pred_check_branch
      %32 = sbr.rel (0) target = $region17
    $region16: #{tpu_custom_call.1} parent=1 // pred_region
      %33 = dma.done [#allocation3], 256
    $region17: #{tpu_custom_call.1} parent=1 // pred_fallthru
      _
    %34 = sfence
    %s35 = sld [smem:[#allocation2 + $0x1]]
    %s36 = sld [smem:[#allocation2]]
    %s37 = smul.f32 %s35, 128.0
    %s38 = sadd.f32 %s36, %s37
    %v39 = vld [vmem:[#allocation6] sm:$0xff]
    %v40 = vld [vmem:[#allocation6 + $0x8] sm:$0xff]
    %v41 = vunpack.c.0.s8 %v39
    %v42 = vunpack.c.1.s8 %v39
    %v43 = vunpack.c.2.s8 %v39
    %v44 = vunpack.c.3.s8 %v39
    %v45 = vunpack.c.0.s8 %v40
    %v46 = vunpack.c.1.s8 %v40
    %v47 = vunpack.c.2.s8 %v40
    %v48 = vunpack.c.3.s8 %v40
    %v49 = vcvt.s32.f32 %v41
    %v50 = vcvt.s32.f32 %v42
    %v51 = vcvt.s32.f32 %v43
    %v52 = vcvt.s32.f32 %v44
    %v53 = vcvt.s32.f32 %v45
    %v54 = vcvt.s32.f32 %v46
    %v55 = vcvt.s32.f32 %v47
    %v56 = vcvt.s32.f32 %v48
    %v57 = vstv %s35
    %v58 = vmul.f32 %v49, %v57
    %v59 = vmul.f32 %v50, %v57
    %v60 = vmul.f32 %v51, %v57
    %v61 = vmul.f32 %v52, %v57
    %v62 = vmul.f32 %v53, %v57
    %v63 = vmul.f32 %v54, %v57
    %v64 = vmul.f32 %v55, %v57
    %v65 = vmul.f32 %v56, %v57
    %v66 = vstv %s38
    %v67 = vadd.f32 %v58, %v66
    %v68 = vadd.f32 %v59, %v66
    %v69 = vadd.f32 %v60, %v66
    %v70 = vadd.f32 %v61, %v66
    %v71 = vadd.f32 %v62, %v66
    %v72 = vadd.f32 %v63, %v66
    %v73 = vadd.f32 %v64, %v66
    %v74 = vadd.f32 %v65, %v66
    %v84 = vunpack.c.l.s4 1966171168
    %v85 = vunpack.c.0.s8 %v84
    %v86 = vlaneseq
    %v87 = vshrl.u32 %v86, 7
    %v88 = vsub.s32 %v85, %v87
    %v89 = vrot.slane %v67, %v88
    %v91 = vunpack.c.l.s4 1966171168
    %v92 = vunpack.c.0.s8 %v91
    %v93 = vlaneseq
    %v94 = vshrl.u32 %v93, 7
    %v95 = vsub.s32 %v92, %v94
    %v96 = vrot.slane %v68, %v95
    %v98 = vunpack.c.l.s4 1966171168
    %v99 = vunpack.c.0.s8 %v98
    %v100 = vlaneseq
    %v101 = vshrl.u32 %v100, 7
    %v102 = vsub.s32 %v99, %v101
    %v103 = vrot.slane %v69, %v102
    %v105 = vunpack.c.l.s4 1966171168
    %v106 = vunpack.c.0.s8 %v105
    %v107 = vlaneseq
    %v108 = vshrl.u32 %v107, 7
    %v109 = vsub.s32 %v106, %v108
    %v110 = vrot.slane %v70, %v109
    %v111 = vcombine.low %v89, %v96
    %v112 = vcombine.low %v103, %v110
    %v114 = vunpack.c.l.s4 1966171168
    %v115 = vunpack.c.0.s8 %v114
    %v116 = vlaneseq
    %v117 = vshrl.u32 %v116, 7
    %v118 = vsub.s32 %v115, %v117
    %v119 = vrot.slane %v111, %v118
    %v121 = vunpack.c.l.s4 1966171168
    %v122 = vunpack.c.0.s8 %v121
    %v123 = vlaneseq
    %v124 = vshrl.u32 %v123, 7
    %v125 = vsub.s32 %v122, %v124
    %v126 = vrot.slane %v112, %v125
    %v127 = vcombine.low %v119, %v126
    %v129 = vunpack.c.l.s4 1966171168
    %v130 = vunpack.c.0.s8 %v129
    %v131 = vlaneseq
    %v132 = vshrl.u32 %v131, 7
    %v133 = vsub.s32 %v130, %v132
    %v134 = vrot.slane %v71, %v133
    %v136 = vunpack.c.l.s4 1966171168
    %v137 = vunpack.c.0.s8 %v136
    %v138 = vlaneseq
    %v139 = vshrl.u32 %v138, 7
    %v140 = vsub.s32 %v137, %v139
    %v141 = vrot.slane %v72, %v140
    %v143 = vunpack.c.l.s4 1966171168
    %v144 = vunpack.c.0.s8 %v143
    %v145 = vlaneseq
    %v146 = vshrl.u32 %v145, 7
    %v147 = vsub.s32 %v144, %v146
    %v148 = vrot.slane %v73, %v147
    %v150 = vunpack.c.l.s4 1966171168
    %v151 = vunpack.c.0.s8 %v150
    %v152 = vlaneseq
    %v153 = vshrl.u32 %v152, 7
    %v154 = vsub.s32 %v151, %v153
    %v155 = vrot.slane %v74, %v154
    %v156 = vcombine.low %v134, %v141
    %v157 = vcombine.low %v148, %v155
    %v159 = vunpack.c.l.s4 1966171168
    %v160 = vunpack.c.0.s8 %v159
    %v161 = vlaneseq
    %v162 = vshrl.u32 %v161, 7
    %v163 = vsub.s32 %v160, %v162
    %v164 = vrot.slane %v156, %v163
    %v166 = vunpack.c.l.s4 1966171168
    %v167 = vunpack.c.0.s8 %v166
    %v168 = vlaneseq
    %v169 = vshrl.u32 %v168, 7
    %v170 = vsub.s32 %v167, %v169
    %v171 = vrot.slane %v157, %v170
    %v172 = vcombine.low %v164, %v171
    %175 = vst [vmem:[#allocation7] sm:$0xff] %v127
    %176 = vst [vmem:[#allocation7 + $0x8] sm:$0xff] %v172
    // Predicated region
    $region18: #{tpu_custom_call.1} parent=1 // pred_check
      _
    $region19: #{tpu_custom_call.1} parent=1 // pred_check_branch
      %178 = sbr.rel (0) target = $region21
    $region20: #{tpu_custom_call.1} parent=1 // pred_region
      %s180 = ssub.s32 256, 256
      %181 = vsyncadd [#allocation4], %s180
      %s183 = sshll.u32 [#allocation7], 4
      %s184 = int_to_ptr.vmem [resolvable:$true] %s183
      %186 = dma.vmem_to_hbm [thread:$0]  %s184, 256, %s2, [#allocation4]
    $region21: #{tpu_custom_call.1} parent=1 // pred_fallthru
      _
    // Predicated region
    $region22: #{tpu_custom_call.1} parent=1 // pred_check
      _
    $region23: #{tpu_custom_call.1} parent=1 // pred_check_branch
      %188 = sbr.rel (0) target = $region25
    $region24: #{tpu_custom_call.1} parent=1 // pred_region
      %189 = dma.done [#allocation4], 256
    $region25: #{tpu_custom_call.1} parent=1 // pred_fallthru
      _
    %190 = vsyncpa [#allocation3], 1
    %191 = vsyncpa [#allocation4], 1
    %192 = vsyncpa [#allocation5], 1

</llo_original>
